<compile_context>
chip_gen: v7x
topology: tpu7x:2x2x1
jax: 0.10.0
libtpu: 0.0.40
codegen_flags: <defaults>
</compile_context>

<pallas_src>
import functools

import jax
import jax.numpy as jnp
from jax.experimental import pallas as pl
from jax.experimental.pallas import tpu as pltpu


def _clip_cls_kernel(scale_ref, x_ref, w_ref, t_ref, out_ref, acc_ref):
    """Grid = (batch_tiles, F_tiles); F (feature) axis is the reduction axis.

    scale_ref : SMEM (1, 1)  f32   exp(logit_scale)
    x_ref     : VMEM (TB, TK) bf16 flattened image tile
    w_ref     : VMEM (TK, D)  bf16 projection tile (backbone stand-in)
    t_ref     : VMEM (N, D)   bf16 pre-normalized text embeddings (resident)
    out_ref   : VMEM (TB, N)  f32  class probabilities (resident across k)
    acc_ref   : VMEM (TB, D)  f32  projection accumulator (scratch)
    """
    k = pl.program_id(1)

    @pl.when(k == 0)
    def _init():
        acc_ref[...] = jnp.zeros_like(acc_ref)

    # "image encoder": accumulate the linear projection (bf16 MXU, f32 accumulate).
    acc_ref[...] += jnp.dot(x_ref[...], w_ref[...],
                            preferred_element_type=jnp.float32)

    @pl.when(k == pl.num_programs(1) - 1)
    def _finalize():
        img = acc_ref[...]                                        # (TB, D) f32
        sq = jnp.sum(img * img, axis=-1, keepdims=True)           # (TB, 1)
        # logit_scale folded into the per-row normalization: one (TB,1)-broadcast
        # multiply instead of an extra full (TB,N) VPU multiply on the logits.
        # Tiny clamp keeps zero-padded batch rows finite (real rows unaffected;
        # the PyTorch reference has no eps but never sees all-zero embeddings).
        inv = scale_ref[0, 0] * jax.lax.rsqrt(jnp.maximum(sq, 1e-12))
        img_n = (img * inv).astype(t_ref.dtype)                   # bf16 for MXU

        # logits_per_image = image_embeds @ text_embeds.T — contract on D, no
        # materialized transpose through the XLU.
        logits = jax.lax.dot_general(
            img_n, t_ref[...],
            dimension_numbers=(((1,), (1,)), ((), ())),
            preferred_element_type=jnp.float32)                   # (TB, N)

        # Softmax(dim=-1)
        m = jnp.max(logits, axis=-1, keepdims=True)
        e = jnp.exp(logits - m)
        denom = jnp.sum(e, axis=-1, keepdims=True)
        out_ref[...] = e * pl.reciprocal(denom, approx=True)


def prepare_params(w_proj, text_embeds, *, tk=256):
    """One-time parameter prep OUTSIDE the hot path: bf16 cast + F-tile padding."""
    F, _ = w_proj.shape
    F_pad = ((F + tk - 1) // tk) * tk
    w = w_proj.astype(jnp.bfloat16)
    if F_pad != F:
        w = jnp.pad(w, ((0, F_pad - F), (0, 0)))
    t = text_embeds.astype(jnp.bfloat16)
    return w, t


@functools.partial(jax.jit, static_argnames=("tb", "tk"))
def classification_forward(image, w_proj_bf16, text_embeds_bf16,
                           logit_scale_exp, *, tb=16, tk=256):
    """image: (B, C, H, W). Returns class probabilities (B, N) f32."""
    B = image.shape[0]
    x = image.reshape(B, -1).astype(jnp.bfloat16)                 # (B, F)
    F = x.shape[1]
    F_pad, D = w_proj_bf16.shape
    N = text_embeds_bf16.shape[0]

    # Pad batch to the bf16 sublane quantum (16 rows) and features to the K tile.
    B_pad = ((B + tb - 1) // tb) * tb
    x = jnp.pad(x, ((0, B_pad - B), (0, F_pad - F)))

    scale = jnp.full((1, 1), logit_scale_exp, dtype=jnp.float32)

    grid = (B_pad // tb, F_pad // tk)
    probs = pl.pallas_call(
        _clip_cls_kernel,
        out_shape=jax.ShapeDtypeStruct((B_pad, N), jnp.float32),
        grid_spec=pltpu.PrefetchScalarGridSpec(
            num_scalar_prefetch=0,
            grid=grid,
            in_specs=[
                pl.BlockSpec((1, 1), lambda b, k: (0, 0),
                             memory_space=pltpu.SMEM),            # exp(logit_scale)
                pl.BlockSpec((tb, tk), lambda b, k: (b, k)),      # image tiles
                pl.BlockSpec((tk, D), lambda b, k: (k, 0)),       # streamed w_proj
                pl.BlockSpec((N, D), lambda b, k: (0, 0)),        # text embeds (resident)
            ],
            out_specs=pl.BlockSpec((tb, N), lambda b, k: (b, 0)), # resident across k
            scratch_shapes=[pltpu.VMEM((tb, D), jnp.float32)],
        ),
        compiler_params=pltpu.CompilerParams(
            dimension_semantics=("parallel", "arbitrary")),
    )(scale, x, w_proj_bf16, text_embeds_bf16)

    return probs[:B]


if __name__ == "__main__":
    # Small, deterministic shapes consistent with the module's forward.
    B, C, H, W = 2, 4, 16, 16        # image batch (NCHW)
    D = 128                          # CLIP joint embedding dim (small synthetic)
    N = 128                          # number of class prompts (text embeddings)
    F = C * H * W

    key = jax.random.PRNGKey(0)
    k_img, k_w, k_txt = jax.random.split(key, 3)

    image = jax.random.normal(k_img, (B, C, H, W), dtype=jnp.float32)

    # Deterministic synthetic parameters (standing in for the frozen CLIP weights).
    w_proj = jax.random.normal(k_w, (F, D), dtype=jnp.float32) * (1.0 / jnp.sqrt(F))

    # Text embeddings are normalized at init time in init_fc_param (glue, not hot path).
    text_raw = jax.random.normal(k_txt, (N, D), dtype=jnp.float32)
    text_embeds = text_raw / jnp.linalg.norm(text_raw, axis=-1, keepdims=True)

    # CLIP init: logit_scale = ln(1/0.07); forward uses exp(logit_scale).
    logit_scale_exp = float(jnp.exp(jnp.log(1.0 / 0.07)))

    # One-time bf16 cast / padding, outside the per-call hot path.
    w_bf16, t_bf16 = prepare_params(w_proj, text_embeds, tk=256)

    probs = classification_forward(image, w_bf16, t_bf16, logit_scale_exp)
    probs = jax.block_until_ready(probs)

    # Sanity: shape and rows of a softmax sum to 1 (approx reciprocal tolerance).
    assert probs.shape == (B, N)
    assert bool(jnp.all(jnp.abs(jnp.sum(probs, axis=-1) - 1.0) < 2e-3))

    # Cross-check against a plain-JAX f32 reference (bf16 params => loose tol).
    img_ref = image.reshape(B, -1) @ w_proj
    img_ref = img_ref / jnp.linalg.norm(img_ref, axis=-1, keepdims=True)
    probs_ref = jax.nn.softmax(img_ref @ text_embeds.T * logit_scale_exp, axis=-1)
    assert bool(jnp.max(jnp.abs(probs - probs_ref)) < 5e-2)

    print("KERNEL_OK")
</pallas_src>

<mosaic_0001>
module attributes {stable_mosaic.version = 11 : i64} {
  func.func @_clip_cls_kernel(%arg0: i32, %arg1: i32, %arg2: memref<1x1xf32, #tpu.memory_space<smem>>, %arg3: memref<16x256xbf16, #tpu.memory_space<vmem>>, %arg4: memref<256x128xbf16, #tpu.memory_space<vmem>>, %arg5: memref<128x128xbf16, #tpu.memory_space<vmem>>, %arg6: memref<16x128xf32, #tpu.memory_space<vmem>>, %arg7: memref<16x128xf32, #tpu.memory_space<vmem>>) attributes {dimension_semantics = [#tpu.dimension_semantics<parallel>, #tpu.dimension_semantics<arbitrary>], iteration_bounds = array<i64: 1, 4>, scalar_prefetch = 0 : i64, scratch_operands = 1 : i64, tpu.core_type = #tpu.core_type<tc>, window_params = [{transform_indices = @transform_0, window_bounds = array<i64: 1, 1>}, {transform_indices = @transform_1, window_bounds = array<i64: 16, 256>}, {transform_indices = @transform_2, window_bounds = array<i64: 256, 128>}, {pipeline_mode = #tpu.pipeline_mode<synchronous>, transform_indices = @transform_3, window_bounds = array<i64: 128, 128>}, {transform_indices = @transform_4, window_bounds = array<i64: 16, 128>}]} {
    %c0_i32 = arith.constant 0 : i32
    %0 = arith.cmpi eq, %arg1, %c0_i32 : i32
    %1 = arith.extui %0 : i1 to i32
    %c0_i32_0 = arith.constant 0 : i32
    %2 = arith.cmpi ne, %1, %c0_i32_0 : i32
    scf.if %2 {
      %cst_9 = arith.constant 0.000000e+00 : f32
      %12 = vector.broadcast %cst_9 : f32 to vector<16x128xf32>
      %c0_10 = arith.constant 0 : index
      %c0_11 = arith.constant 0 : index
      %13 = vector.load %arg7[%c0_10, %c0_11] : memref<16x128xf32, #tpu.memory_space<vmem>>, vector<16x128xf32>
      tpu.vector_store %arg7[%c0_10, %c0_11], %12 {strides = array<i32>} : memref<16x128xf32, #tpu.memory_space<vmem>>, vector<16x128xf32>,
    } else {
    }
    %c0 = arith.constant 0 : index
    %c0_1 = arith.constant 0 : index
    %3 = vector.load %arg7[%c0, %c0_1] : memref<16x128xf32, #tpu.memory_space<vmem>>, vector<16x128xf32>
    %c0_2 = arith.constant 0 : index
    %c0_3 = arith.constant 0 : index
    %4 = vector.load %arg3[%c0_2, %c0_3] : memref<16x256xbf16, #tpu.memory_space<vmem>>, vector<16x256xbf16>
    %c0_4 = arith.constant 0 : index
    %c0_5 = arith.constant 0 : index
    %5 = vector.load %arg4[%c0_4, %c0_5] : memref<256x128xbf16, #tpu.memory_space<vmem>>, vector<256x128xbf16>
    %cst = arith.constant dense<0.000000e+00> : vector<16x128xf32>
    %6 = tpu.matmul %4, %5, %cst {dimension_numbers = #tpu.dot_dimension_numbers<[1], [0], [0], [1], [0, 0, 1, 1], [], []>} : vector<16x256xbf16>, vector<256x128xbf16>, vector<16x128xf32> -> vector<16x128xf32>
    %7 = arith.addf %3, %6 : vector<16x128xf32>
    %c0_6 = arith.constant 0 : index
    %c0_7 = arith.constant 0 : index
    %8 = vector.load %arg7[%c0_6, %c0_7] : memref<16x128xf32, #tpu.memory_space<vmem>>, vector<16x128xf32>
    tpu.vector_store %arg7[%c0_6, %c0_7], %7 {strides = array<i32>} : memref<16x128xf32, #tpu.memory_space<vmem>>, vector<16x128xf32>,
    %c3_i32 = arith.constant 3 : i32
    %9 = arith.cmpi eq, %arg1, %c3_i32 : i32
    %10 = arith.extui %9 : i1 to i32
    %c0_i32_8 = arith.constant 0 : i32
    %11 = arith.cmpi ne, %10, %c0_i32_8 : i32
    scf.if %11 {
      %c0_9 = arith.constant 0 : index
      %c0_10 = arith.constant 0 : index
      %12 = vector.load %arg7[%c0_9, %c0_10] : memref<16x128xf32, #tpu.memory_space<vmem>>, vector<16x128xf32>
      %13 = arith.mulf %12, %12 : vector<16x128xf32>
      %cst_11 = arith.constant dense<0.000000e+00> : vector<16xf32>
      %14 = vector.multi_reduction <add>, %13, %cst_11 [1] : vector<16x128xf32> to vector<16xf32>
      %15 = vector.shape_cast %14 : vector<16xf32> to vector<16x1xf32>
      %c0_12 = arith.constant 0 : index
      %c0_13 = arith.constant 0 : index
      %16 = memref.load %arg2[%c0_12, %c0_13] : memref<1x1xf32, #tpu.memory_space<smem>>
      %cst_14 = arith.constant 9.99999996E-13 : f32
      %17 = vector.broadcast %cst_14 : f32 to vector<16x1xf32>
      %18 = arith.maximumf %15, %17 : vector<16x1xf32>
      %19 = math.rsqrt %18 : vector<16x1xf32>
      %20 = vector.broadcast %16 : f32 to vector<16x1xf32>
      %21 = arith.mulf %20, %19 : vector<16x1xf32>
      %22 = vector.broadcast %21 : vector<16x1xf32> to vector<16x128xf32>
      %23 = arith.mulf %12, %22 : vector<16x128xf32>
      %24 = arith.truncf %23 : vector<16x128xf32> to vector<16x128xbf16>
      %c0_15 = arith.constant 0 : index
      %c0_16 = arith.constant 0 : index
      %25 = vector.load %arg5[%c0_15, %c0_16] : memref<128x128xbf16, #tpu.memory_space<vmem>>, vector<128x128xbf16>
      %cst_17 = arith.constant dense<0.000000e+00> : vector<16x128xf32>
      %26 = tpu.matmul %24, %25, %cst_17 {dimension_numbers = #tpu.dot_dimension_numbers<[1], [1], [0], [0], [0, 0, 1, 0], [], []>} : vector<16x128xbf16>, vector<128x128xbf16>, vector<16x128xf32> -> vector<16x128xf32>
      %cst_18 = arith.constant dense<0xFF800000> : vector<16xf32>
      %27 = vector.multi_reduction <maximumf>, %26, %cst_18 [1] : vector<16x128xf32> to vector<16xf32>
      %28 = vector.shape_cast %27 : vector<16xf32> to vector<16x1xf32>
      %29 = vector.broadcast %28 : vector<16x1xf32> to vector<16x128xf32>
      %30 = arith.subf %26, %29 : vector<16x128xf32>
      %31 = math.exp %30 : vector<16x128xf32>
      %cst_19 = arith.constant dense<0.000000e+00> : vector<16xf32>
      %32 = vector.multi_reduction <add>, %31, %cst_19 [1] : vector<16x128xf32> to vector<16xf32>
      %33 = vector.shape_cast %32 : vector<16xf32> to vector<16x1xf32>
      %34 = tpu.reciprocal %33 {approx = true} : vector<16x1xf32> -> vector<16x1xf32>
      %35 = vector.broadcast %34 : vector<16x1xf32> to vector<16x128xf32>
      %36 = arith.mulf %31, %35 : vector<16x128xf32>
      %c0_20 = arith.constant 0 : index
      %c0_21 = arith.constant 0 : index
      %37 = vector.load %arg6[%c0_20, %c0_21] : memref<16x128xf32, #tpu.memory_space<vmem>>, vector<16x128xf32>
      tpu.vector_store %arg6[%c0_20, %c0_21], %36 {strides = array<i32>} : memref<16x128xf32, #tpu.memory_space<vmem>>, vector<16x128xf32>,
    } else {
    }
    return
  }
  func.func @transform_0(%arg0: i32, %arg1: i32) -> (i32, i32) {
    %c0_i32 = arith.constant 0 : i32
    %c0_i32_0 = arith.constant 0 : i32
    %c0_i32_1 = arith.constant 0 : i32
    return %c0_i32, %c0_i32_0 : i32, i32
  }
  func.func @transform_1(%arg0: i32, %arg1: i32) -> (i32, i32) {
    %c0_i32 = arith.constant 0 : i32
    return %arg0, %arg1 : i32, i32
  }
  func.func @transform_2(%arg0: i32, %arg1: i32) -> (i32, i32) {
    %c0_i32 = arith.constant 0 : i32
    %c0_i32_0 = arith.constant 0 : i32
    return %arg1, %c0_i32 : i32, i32
  }
  func.func @transform_3(%arg0: i32, %arg1: i32) -> (i32, i32) {
    %c0_i32 = arith.constant 0 : i32
    %c0_i32_0 = arith.constant 0 : i32
    %c0_i32_1 = arith.constant 0 : i32
    return %c0_i32, %c0_i32_0 : i32, i32
  }
  func.func @transform_4(%arg0: i32, %arg1: i32) -> (i32, i32) {
    %c0_i32 = arith.constant 0 : i32
    %c0_i32_0 = arith.constant 0 : i32
    return %arg0, %c0_i32 : i32, i32
  }
}

</mosaic_0001>

<llo_original>
// kernel: classification_forward.1
$region0: #{classification_forward.1}
  #allocation0 [shape = 'u32[]', space=smem, size = 0x4, offset = 0x4, fixed_abs, tag = 'smem constant byte address 0x4 - core index']
  #allocation1 [shape = 'u32[144,128]{1,0:T(1,128)}', space=vmem, size = 0x12000, scoped, tag = 'internal scratch']
  #allocation2 [shape = 'f32[16,128]{1,0:T(8,128)}', space=vmem, size = 0x2000, scoped, tag = 'scratch operand']
  #allocation3 [shape = 'f32[1,1]{1,0:T(1,128)S(6)}', space=smem, size = 0x200, scoped, tag = 'scoped memory for classification_forward.1']
  %s0 = inlined_call_operand.<no memory space> [shape: f32[1,1], index: 0, kind: input, shape index: {}]
  %s1 = inlined_call_operand.vmem [shape: bf16[16,1024], index: 1, kind: input, shape index: {}]
  %s2 = inlined_call_operand.hbm [shape: bf16[1024,128], index: 2, kind: input, shape index: {}]
  %s3 = inlined_call_operand.vmem [shape: bf16[128,128], index: 3, kind: input, shape index: {}]
  %s4 = inlined_call_operand.vmem [shape: f32[16,128], index: 4, kind: output, shape index: {}]
  %s5 = sld [smem:[#allocation0]]
  $region99: #{classification_forward.1} parent=0
    _
  %s7 = ssub.s32 1, %s5
  %s8 = scalar_select 0, %s7, %s5
  %9 = sst [smem:[#allocation3]] %s0
  $region1: #{classification_forward.1} parent=0
    #allocation4 [shape = 'u8[16384]{0}', space=vmem, size = 0x4000, scoped, tag = 'input window, operand 1']
    #allocation5 [shape = 'u8[131072]{0}', space=vmem, size = 0x20000, scoped, tag = 'input window, operand 2']
    #allocation6 [shape = 's32[2]{0}', space=sflag, size = 0x8, scoped, tag = 'scoped memory for classification_forward.1']
    %10 = vsyncpa [#allocation6], 0
    %s11 = scalar_lea.sflag [#allocation6], 1
    %12 = vsyncpa %s11, 0
    loop: start=0, step=1, limit=6
    $region2: #{classification_forward.1} parent=1 // loop_pre_header
      _
    $region3: #{classification_forward.1} parent=1 // loop_header
      %s14 = sphi 0, %s18
      %p15 = scmp.ge.s32.totalorder %s14, 6
      %s21 = sphi 0, %s33
      %s22 = sphi 0, %s29
      %s23 = sphi 0, %s21
      %s24 = sphi 0, %s22
      %s25 = sphi 0, %s23
      %s26 = sphi 0, %s24
      %s34 = sphi 0, %s34
      %s36 = sphi 0, %s34
      %s37 = sphi 0, %s36
      %s51 = sphi 0, %s37
      %s59 = sphi 0, %s61
      %s62 = sphi 0, %s59
      %s63 = sphi 0, %s62
      %s79 = sphi 0, %s63
      %s85 = sphi 0, %s87
      %s88 = sphi 0, %s85
      %s89 = sphi 0, %s88
      %s105 = sphi 0, %s89
      %s109 = sphi 0, %s109
      %s111 = sphi 0, %s109
      %s112 = sphi 0, %s111
      %s126 = sphi 0, %s112
      %s132 = sphi 0, %s134
      %s135 = sphi 0, %s132
      %s136 = sphi 0, %s135
      %s152 = sphi 0, %s136
    $region4: #{classification_forward.1} parent=1 // loop_header_branch
      %17 = sbr.rel (%p15) target = $region8
    $region5: #{classification_forward.1} parent=1 // loop_body
      %s19 = ssub.s32 %s14, 1
      %s20 = ssub.s32 %s14, 2
      %s27 = sadd.s32 1, %s22
      %p28 = scmp.ge.s32.totalorder %s27, 4
      %s29 = scalar_select %p28, 0, %s27
      %s30 = sadd.s32 1, %s21
      %s31 = scalar_select %p28, %s30, %s21
      %p32 = scmp.ge.s32.totalorder %s31, 1
      %s33 = scalar_select %p32, 0, %s31
      %s35 = sadd.s32 %s34, 1
      %p38 = scmp.eq.s32.totalorder %s14, 3
      %p39 = scmp.ne.s32.totalorder %s34, %s36
      %p40 = scmp.eq.s32.totalorder %s14, 0
      %p41 = por %p39, %p40
      %p42 = scmp.ne.s32.totalorder %s34, %s36
      %p43 = scmp.eq.s32.totalorder %s19, 3
      %p44 = por %p42, %p43
      %p45 = scmp.ne.s32.totalorder %s36, %s37
      %p46 = scmp.eq.s32.totalorder %s19, 0
      %p47 = por %p45, %p46
      %p48 = scmp.ne.s32.totalorder %s36, %s37
      %p49 = scmp.eq.s32.totalorder %s20, 3
      %p50 = por %p48, %p49
      %p52 = scmp.ne.s32.totalorder %s37, %s51
      %p53 = scmp.eq.s32.totalorder %s20, 0
      %p54 = por %p52, %p53
      %s55 = ssub.s32 %s21, %s33
      %s56 = ssub.s32 %s22, %s29
      %s57 = sor.u32 %s55, %s56
      %p58 = scmp.eq.s32.totalorder %s57, 0
      %s60 = sadd.s32 %s59, 1
      %s61 = scalar_select %p58, %s59, %s60
      %p64 = pneg %p58
      %p65 = scmp.eq.s32.totalorder %s14, 3
      %p66 = por %p64, %p65
      %p67 = scmp.ne.s32.totalorder %s59, %s62
      %p68 = scmp.eq.s32.totalorder %s14, 0
      %p69 = por %p67, %p68
      %p70 = scmp.ne.s32.totalorder %s59, %s62
      %p71 = scmp.eq.s32.totalorder %s19, 3
      %p72 = por %p70, %p71
      %p73 = scmp.ne.s32.totalorder %s62, %s63
      %p74 = scmp.eq.s32.totalorder %s19, 0
      %p75 = por %p73, %p74
      %p76 = scmp.ne.s32.totalorder %s62, %s63
      %p77 = scmp.eq.s32.totalorder %s20, 3
      %p78 = por %p76, %p77
      %p80 = scmp.ne.s32.totalorder %s63, %s79
      %p81 = scmp.eq.s32.totalorder %s20, 0
      %p82 = por %p80, %p81
      %s83 = ssub.s32 %s22, %s29
      %p84 = scmp.eq.s32.totalorder %s83, 0
      %s86 = sadd.s32 %s85, 1
      %s87 = scalar_select %p84, %s85, %s86
      %p90 = pneg %p84
      %p91 = scmp.eq.s32.totalorder %s14, 3
      %p92 = por %p90, %p91
      %p93 = scmp.ne.s32.totalorder %s85, %s88
      %p94 = scmp.eq.s32.totalorder %s14, 0
      %p95 = por %p93, %p94
      %p96 = scmp.ne.s32.totalorder %s85, %s88
      %p97 = scmp.eq.s32.totalorder %s19, 3
      %p98 = por %p96, %p97
      %p99 = scmp.ne.s32.totalorder %s88, %s89
      %p100 = scmp.eq.s32.totalorder %s19, 0
      %p101 = por %p99, %p100
      %p102 = scmp.ne.s32.totalorder %s88, %s89
      %p103 = scmp.eq.s32.totalorder %s20, 3
      %p104 = por %p102, %p103
      %p106 = scmp.ne.s32.totalorder %s89, %s105
      %p107 = scmp.eq.s32.totalorder %s20, 0
      %p108 = por %p106, %p107
      %s110 = sadd.s32 %s109, 1
      %p113 = scmp.eq.s32.totalorder %s14, 3
      %p114 = scmp.ne.s32.totalorder %s109, %s111
      %p115 = scmp.eq.s32.totalorder %s14, 0
      %p116 = por %p114, %p115
      %p117 = scmp.ne.s32.totalorder %s109, %s111
      %p118 = scmp.eq.s32.totalorder %s19, 3
      %p119 = por %p117, %p118
      %p120 = scmp.ne.s32.totalorder %s111, %s112
      %p121 = scmp.eq.s32.totalorder %s19, 0
      %p122 = por %p120, %p121
      %p123 = scmp.ne.s32.totalorder %s111, %s112
      %p124 = scmp.eq.s32.totalorder %s20, 3
      %p125 = por %p123, %p124
      %p127 = scmp.ne.s32.totalorder %s112, %s126
      %p128 = scmp.eq.s32.totalorder %s20, 0
      %p129 = por %p127, %p128
      %s130 = ssub.s32 %s21, %s33
      %p131 = scmp.eq.s32.totalorder %s130, 0
      %s133 = sadd.s32 %s132, 1
      %s134 = scalar_select %p131, %s132, %s133
      %p137 = pneg %p131
      %p138 = scmp.eq.s32.totalorder %s14, 3
      %p139 = por %p137, %p138
      %p140 = scmp.ne.s32.totalorder %s132, %s135
      %p141 = scmp.eq.s32.totalorder %s14, 0
      %p142 = por %p140, %p141
      %p143 = scmp.ne.s32.totalorder %s132, %s135
      %p144 = scmp.eq.s32.totalorder %s19, 3
      %p145 = por %p143, %p144
      %p146 = scmp.ne.s32.totalorder %s135, %s136
      %p147 = scmp.eq.s32.totalorder %s19, 0
      %p148 = por %p146, %p147
      %p149 = scmp.ne.s32.totalorder %s135, %s136
      %p150 = scmp.eq.s32.totalorder %s20, 3
      %p151 = por %p149, %p150
      %p153 = scmp.ne.s32.totalorder %s136, %s152
      %p154 = scmp.eq.s32.totalorder %s20, 0
      %p155 = por %p153, %p154
      %p156 = scmp.le.s32.totalorder 1, %s14
      %p157 = scmp.lt.s32.totalorder %s14, 5
      %p158 = pnand %p156, %p157
      %p159 = pneg %p158
      // Predicated region
      $region9: #{classification_forward.1} parent=5 // pred_check
        _
      $region10: #{classification_forward.1} parent=5 // pred_check_branch
        %161 = sbr.rel (%p158) target = $region12
      $region11: #{classification_forward.1} parent=5 // pred_region
        %s162 = ssub.s32 %s14, 1
        // Predicated region
        $region13: #{classification_forward.1} parent=11 // pred_check
          %p163 = pneg %p47
        $region14: #{classification_forward.1} parent=11 // pred_check_branch
          %165 = sbr.rel (%p163) target = $region16
        $region15: #{classification_forward.1} parent=11 // pred_region
          _
        $region16: #{classification_forward.1} parent=11 // pred_fallthru
          _
        // Predicated region
        $region17: #{classification_forward.1} parent=11 // pred_check
          %p166 = pneg %p122
        $region18: #{classification_forward.1} parent=11 // pred_check_branch
          %168 = sbr.rel (%p166) target = $region20
        $region19: #{classification_forward.1} parent=11 // pred_region
          _
        $region20: #{classification_forward.1} parent=11 // pred_fallthru
          _
      $region12: #{classification_forward.1} parent=5 // pred_fallthru
        _
      %p169 = scmp.lt.s32.totalorder %s14, 4
      // Predicated region
      $region21: #{classification_forward.1} parent=5 // pred_check
        %p170 = pneg %p169
      $region22: #{classification_forward.1} parent=5 // pred_check_branch
        %172 = sbr.rel (%p170) target = $region24
      $region23: #{classification_forward.1} parent=5 // pred_region
        // Predicated region
        $region25: #{classification_forward.1} parent=23 // pred_check
          %p173 = pneg %p69
        $region26: #{classification_forward.1} parent=23 // pred_check_branch
          %175 = sbr.rel (%p173) target = $region28
        $region27: #{classification_forward.1} parent=23 // pred_region
          %s176 = sand.u32 %s59, 1
          %s177 = sand.u32 %s59, 1
          %s178 = smul.addr %s177, 16
          %s179 = scalar_lea.vmem [#allocation4], %s178
          %s180 = smul.u32 2, %s21
          %s181 = smul.u32 2, %s22
          %s182 = smul.addr %s180, 8
          %s183 = sadd.s32 %s181, %s182
          %s184 = smul.addr %s183, 4
          %s185 = scalar_lea.vmem %s1, %s184
          // Predicated region
          $region29: #{classification_forward.1} parent=27 // pred_check
            _
          $region30: #{classification_forward.1} parent=27 // pred_check_branch
            %187 = sbr.rel (0) target = $region32
          $region31: #{classification_forward.1} parent=27 // pred_region
            // Predicated region
            $region33: #{classification_forward.1} parent=31 // pred_check
              _
            $region34: #{classification_forward.1} parent=31 // pred_check_branch
              %189 = sbr.rel (0) target = $region36
            $region35: #{classification_forward.1} parent=31 // pred_region
              // Predicated region
              $region48: #{classification_forward.1} parent=35 // pred_check
                _
              $region49: #{classification_forward.1} parent=35 // pred_check_branch
                %206 = sbr.rel (0) target = $region51
              $region50: #{classification_forward.1} parent=35 // pred_region
                loop: start=0, step=1, limit=1
                $region52: #{classification_forward.1} parent=50 // loop_pre_header
                  _
                $region53: #{classification_forward.1} parent=50 // loop_header
                  %s208 = sphi 0, %s212
                  %p209 = scmp.ge.s32.totalorder %s208, 1
                  %s213 = sphi %s185, %s185
                  %s214 = sphi %s179, %s179
                $region54: #{classification_forward.1} parent=50 // loop_header_branch
                  %211 = sbr.rel (%p209) target = $region58
                $region55: #{classification_forward.1} parent=50 // loop_body
                  %v215 = vld [vmem:[%s213] sm:$0xff]
                  %216 = vst [vmem:[%s214] sm:$0xff] %v215
                  %v217 = vld [vmem:[%s213 + $0x20] sm:$0xff]
                  %218 = vst [vmem:[%s214 + $0x8] sm:$0xff] %v217
                $region56: #{classification_forward.1} parent=50 // loop_footer
                  %s212 = sadd.s32 1, %s208
                $region57: #{classification_forward.1} parent=50 // loop_footer_branch
                  %207 = sbr.rel target = $region53
                $region58: #{classification_forward.1} parent=50 // loop_exit
                  _
              $region51: #{classification_forward.1} parent=35 // pred_fallthru
                _
              // Predicated region
              $region59: #{classification_forward.1} parent=35 // pred_check
                _
              $region60: #{classification_forward.1} parent=35 // pred_check_branch
                %220 = sbr.rel target = $region62
              $region61: #{classification_forward.1} parent=35 // pred_region
                _
              $region62: #{classification_forward.1} parent=35 // pred_fallthru
                _
            $region36: #{classification_forward.1} parent=31 // pred_fallthru
              _
            // Predicated region
            $region37: #{classification_forward.1} parent=31 // pred_check
              _
            $region38: #{classification_forward.1} parent=31 // pred_check_branch
              %191 = sbr.rel target = $region40
            $region39: #{classification_forward.1} parent=31 // pred_region
              loop: start=0, step=1, limit=1
              $region41: #{classification_forward.1} parent=39 // loop_pre_header
                _
              $region42: #{classification_forward.1} parent=39 // loop_header
                %s194 = sphi 0, %s198
                %p195 = scmp.ge.s32.totalorder %s194, 1
                %s199 = sphi %s185, %s185
                %s200 = sphi %s179, %s179
              $region43: #{classification_forward.1} parent=39 // loop_header_branch
                %197 = sbr.rel (%p195) target = $region47
              $region44: #{classification_forward.1} parent=39 // loop_body
                %v201 = vld [vmem:[%s199] sm:$0xff]
                %202 = vst [vmem:[%s200] sm:$0xff] %v201
                %v203 = vld [vmem:[%s199 + $0x20] sm:$0xff]
                %204 = vst [vmem:[%s200 + $0x8] sm:$0xff] %v203
              $region45: #{classification_forward.1} parent=39 // loop_footer
                %s198 = sadd.s32 1, %s194
              $region46: #{classification_forward.1} parent=39 // loop_footer_branch
                %193 = sbr.rel target = $region42
              $region47: #{classification_forward.1} parent=39 // loop_exit
                _
            $region40: #{classification_forward.1} parent=31 // pred_fallthru
              _
          $region32: #{classification_forward.1} parent=27 // pred_fallthru
            _
          %221 = vnop
        $region28: #{classification_forward.1} parent=23 // pred_fallthru
          _
        // Predicated region
        $region63: #{classification_forward.1} parent=23 // pred_check
          %p222 = pneg %p95
        $region64: #{classification_forward.1} parent=23 // pred_check_branch
          %224 = sbr.rel (%p222) target = $region66
        $region65: #{classification_forward.1} parent=23 // pred_region
          %s225 = sand.u32 %s85, 1
          %s226 = scalar_lea.sflag [#allocation6], %s225
          %s227 = sand.u32 %s85, 1
          %s228 = smul.addr %s227, 128
          %s229 = scalar_lea.vmem [#allocation5], %s228
          %s230 = smul.u32 32, %s22
          %s232 = ssub.s32 2048, 2048
          %233 = vsyncadd %s226, %s232
          %s234 = smul.addr %s230, 64
          %s235 = scalar_lea.hbm %s2, %s234
          %s236 = sshll.u32 %s229, 4
          %s237 = int_to_ptr.vmem [resolvable:$true] %s236
          %242 = dma.hbm_to_vmem [thread:$0]  %s235, 2048, %s237, %s226, 64, 64, 4
        $region66: #{classification_forward.1} parent=23 // pred_fallthru
          _
      $region24: #{classification_forward.1} parent=5 // pred_fallthru
        _
      %p243 = scmp.le.s32.totalorder 1, %s14
      %p244 = scmp.lt.s32.totalorder %s14, 5
      %p245 = pnand %p243, %p244
      %p246 = pneg %p245
      // Predicated region
      $region67: #{classification_forward.1} parent=5 // pred_check
        _
      $region68: #{classification_forward.1} parent=5 // pred_check_branch
        %248 = sbr.rel (%p245) target = $region70
      $region69: #{classification_forward.1} parent=5 // pred_region
        %s249 = ssub.s32 %s14, 1
        %s250 = sand.u32 %s62, 1
        %s251 = sand.u32 %s62, 1
        %s252 = smul.addr %s251, 16
        %s253 = scalar_lea.vmem [#allocation4], %s252
        // Predicated region
        $region71: #{classification_forward.1} parent=69 // pred_check
          %p254 = pneg %p75
        $region72: #{classification_forward.1} parent=69 // pred_check_branch
          %256 = sbr.rel (%p254) target = $region74
        $region73: #{classification_forward.1} parent=69 // pred_region
          _
        $region74: #{classification_forward.1} parent=69 // pred_fallthru
          _
        %s257 = sand.u32 %s88, 1
        %s258 = scalar_lea.sflag [#allocation6], %s257
        %s259 = sand.u32 %s88, 1
        %s260 = smul.addr %s259, 128
        %s261 = scalar_lea.vmem [#allocation5], %s260
        // Predicated region
        $region75: #{classification_forward.1} parent=69 // pred_check
          %p262 = pneg %p101
        $region76: #{classification_forward.1} parent=69 // pred_check_branch
          %264 = sbr.rel (%p262) target = $region78
        $region77: #{classification_forward.1} parent=69 // pred_region
          %265 = dma.done %s258, 2048
        $region78: #{classification_forward.1} parent=69 // pred_fallthru
          _
        %p266 = pneg %p47
        %p267 = pneg %p44
        %s268 = sand.u32 %s62, 1
        %s269 = sand.u32 %s62, 1
        %s270 = smul.addr %s269, 16
        %s271 = scalar_lea.vmem [#allocation4], %s270
        %p272 = pneg %p75
        %p273 = pneg %p72
        %s274 = sand.u32 %s88, 1
        %s275 = scalar_lea.sflag [#allocation6], %s274
        %s276 = sand.u32 %s88, 1
        %s277 = smul.addr %s276, 128
        %s278 = scalar_lea.vmem [#allocation5], %s277
        %p279 = pneg %p101
        %p280 = pneg %p98
        %p281 = pneg %p122
        %p282 = pneg %p119
        %p283 = pneg %p148
        %p284 = pneg %p145
        %s285 = smul.u32 2, %s23
        %p286 = scmp.lt.s32.totalorder %s285, 1
        %s287 = scalar_select %p286, %s285, 1
        %s288 = smul.addr %s287, 8
        %s289 = scalar_lea.vmem %s4, %s288
        %s290 = smul.u32 2, %s23
        %s291 = smul.u32 2, %s24
        %s292 = smul.u32 32, %s24
        %s293 = smul.u32 2, %s23
        %p294 = scmp.lt.s32.totalorder %s293, 1
        %s295 = scalar_select %p294, %s293, 1
        %s296 = smul.addr %s295, 8
        %s297 = scalar_lea.vmem %s4, %s296
        %s298 = smul.u32 2, %s23
        %p300 = scmp.eq.s32.totalorder %s24, 0
        // Predicated region
        $region79: #{classification_forward.1} parent=69 // pred_check
          %p301 = pneg %p300
        $region80: #{classification_forward.1} parent=69 // pred_check_branch
          %303 = sbr.rel (%p301) target = $region82
        $region81: #{classification_forward.1} parent=69 // pred_region
          %304 = vst [vmem:[#allocation2] sm:$0xff] 0.0
          %305 = vst [vmem:[#allocation2 + $0x8] sm:$0xff] 0.0
        $region82: #{classification_forward.1} parent=69 // pred_fallthru
          _
        %v306 = vld [vmem:[#allocation2] sm:$0xff]
        %v307 = vld [vmem:[#allocation2 + $0x8] sm:$0xff]
        %v308 = vld [vmem:[%s253] sm:$0xff]
        %v309 = vld [vmem:[%s253 + $0x8] sm:$0xff]
        %v310 = vld [vmem:[%s261] sm:$0xf]
        %v311 = vld [vmem:[%s261 + $0x4] sm:$0xf]
        %v312 = vld [vmem:[%s261 + $0x8] sm:$0xf]
        %v313 = vld [vmem:[%s261 + $0xc] sm:$0xf]
        %v314 = vld [vmem:[%s261 + $0x10] sm:$0xf]
        %v315 = vld [vmem:[%s261 + $0x14] sm:$0xf]
        %v316 = vld [vmem:[%s261 + $0x18] sm:$0xf]
        %v317 = vld [vmem:[%s261 + $0x1c] sm:$0xf]
        %v318 = vld [vmem:[%s261 + $0x20] sm:$0xf]
        %v319 = vld [vmem:[%s261 + $0x24] sm:$0xf]
        %v320 = vld [vmem:[%s261 + $0x28] sm:$0xf]
        %v321 = vld [vmem:[%s261 + $0x2c] sm:$0xf]
        %v322 = vld [vmem:[%s261 + $0x30] sm:$0xf]
        %v323 = vld [vmem:[%s261 + $0x34] sm:$0xf]
        %v324 = vld [vmem:[%s261 + $0x38] sm:$0xf]
        %v325 = vld [vmem:[%s261 + $0x3c] sm:$0xf]
        %v326 = vld [vmem:[%s261 + $0x40] sm:$0xf]
        %v327 = vld [vmem:[%s261 + $0x44] sm:$0xf]
        %v328 = vld [vmem:[%s261 + $0x48] sm:$0xf]
        %v329 = vld [vmem:[%s261 + $0x4c] sm:$0xf]
        %v330 = vld [vmem:[%s261 + $0x50] sm:$0xf]
        %v331 = vld [vmem:[%s261 + $0x54] sm:$0xf]
        %v332 = vld [vmem:[%s261 + $0x58] sm:$0xf]
        %v333 = vld [vmem:[%s261 + $0x5c] sm:$0xf]
        %v334 = vld [vmem:[%s261 + $0x60] sm:$0xf]
        %v335 = vld [vmem:[%s261 + $0x64] sm:$0xf]
        %v336 = vld [vmem:[%s261 + $0x68] sm:$0xf]
        %v337 = vld [vmem:[%s261 + $0x6c] sm:$0xf]
        %v338 = vld [vmem:[%s261 + $0x70] sm:$0xf]
        %v339 = vld [vmem:[%s261 + $0x74] sm:$0xf]
        %v340 = vld [vmem:[%s261 + $0x78] sm:$0xf]
        %v341 = vld [vmem:[%s261 + $0x7c] sm:$0xf]
        %v344 = vunpack.c.l.b16 %v308
        %v345 = vunpack.c.h.b16 %v308
        %v346 = vunpack.c.l.b16 %v309
        %v347 = vunpack.c.h.b16 %v309
        %v348 = vpack.c.b16 %v346, %v344
        %v349 = vpack.c.b16 %v347, %v345
        %v384 = vunpack.c.l.b16 %v310
        %v385 = vunpack.c.l.b16 %v311
        %v386 = vunpack.c.l.b16 %v312
        %v387 = vunpack.c.l.b16 %v313
        %v388 = vunpack.c.l.b16 %v314
        %v389 = vunpack.c.l.b16 %v315
        %v390 = vunpack.c.l.b16 %v316
        %v391 = vunpack.c.l.b16 %v317
        %v392 = vunpack.c.l.b16 %v318
        %v393 = vunpack.c.l.b16 %v319
        %v394 = vunpack.c.l.b16 %v320
        %v395 = vunpack.c.l.b16 %v321
        %v396 = vunpack.c.l.b16 %v322
        %v397 = vunpack.c.l.b16 %v323
        %v398 = vunpack.c.l.b16 %v324
        %v399 = vunpack.c.l.b16 %v325
        %v400 = vunpack.c.l.b16 %v326
        %v401 = vunpack.c.l.b16 %v327
        %v402 = vunpack.c.l.b16 %v328
        %v403 = vunpack.c.l.b16 %v329
        %v404 = vunpack.c.l.b16 %v330
        %v405 = vunpack.c.l.b16 %v331
        %v406 = vunpack.c.l.b16 %v332
        %v407 = vunpack.c.l.b16 %v333
        %v408 = vunpack.c.l.b16 %v334
        %v409 = vunpack.c.l.b16 %v335
        %v410 = vunpack.c.l.b16 %v336
        %v411 = vunpack.c.l.b16 %v337
        %v412 = vunpack.c.l.b16 %v338
        %v413 = vunpack.c.l.b16 %v339
        %v414 = vunpack.c.l.b16 %v340
        %v415 = vunpack.c.l.b16 %v341
        %v416 = vpack.c.b16 %v385, %v384
        %v417 = vpack.c.b16 %v387, %v386
        %v418 = vpack.c.b16 %v389, %v388
        %v419 = vpack.c.b16 %v391, %v390
        %v420 = vpack.c.b16 %v393, %v392
        %v421 = vpack.c.b16 %v395, %v394
        %v422 = vpack.c.b16 %v397, %v396
        %v423 = vpack.c.b16 %v399, %v398
        %v424 = vpack.c.b16 %v401, %v400
        %v425 = vpack.c.b16 %v403, %v402
        %v426 = vpack.c.b16 %v405, %v404
        %v427 = vpack.c.b16 %v407, %v406
        %v428 = vpack.c.b16 %v409, %v408
        %v429 = vpack.c.b16 %v411, %v410
        %v430 = vpack.c.b16 %v413, %v412
        %v431 = vpack.c.b16 %v415, %v414
        %448 = vmatprep.subr.bf16.mxu0 0
        %449 = vmatpush1.bf16.msra.mxu0 %v416
        %450 = vmatprep.subr.bf16.mxu0 0
        %451 = vmatpush1.bf16.msra.mxu0 %v417
        %452 = vmatprep.subr.bf16.mxu0 0
        %453 = vmatpush1.bf16.msra.mxu0 %v418
        %454 = vmatprep.subr.bf16.mxu0 0
        %455 = vmatpush1.bf16.msra.mxu0 %v419
        %456 = vmatprep.subr.bf16.mxu0 0
        %457 = vmatpush1.bf16.msra.mxu0 %v420
        %458 = vmatprep.subr.bf16.mxu0 0
        %459 = vmatpush1.bf16.msra.mxu0 %v421
        %460 = vmatprep.subr.bf16.mxu0 0
        %461 = vmatpush1.bf16.msra.mxu0 %v422
        %462 = vmatprep.subr.bf16.mxu0 0
        %463 = vmatpush1.bf16.msra.mxu0 %v423
        %464 = vmatprep.subr.bf16.mxu0 0
        %465 = vmatpush1.bf16.msra.mxu0 %v424
        %466 = vmatprep.subr.bf16.mxu0 0
        %467 = vmatpush1.bf16.msra.mxu0 %v425
        %468 = vmatprep.subr.bf16.mxu0 0
        %469 = vmatpush1.bf16.msra.mxu0 %v426
        %470 = vmatprep.subr.bf16.mxu0 0
        %471 = vmatpush1.bf16.msra.mxu0 %v427
        %472 = vmatprep.subr.bf16.mxu0 0
        %473 = vmatpush1.bf16.msra.mxu0 %v428
        %474 = vmatprep.subr.bf16.mxu0 0
        %475 = vmatpush1.bf16.msra.mxu0 %v429
        %476 = vmatprep.subr.bf16.mxu0 0
        %477 = vmatpush1.bf16.msra.mxu0 %v430
        %478 = vmatprep.subr.bf16.mxu0 0
        %479 = vmatpush1.bf16.msra.mxu0 %v431
        %480 = vmatprep.mubr.bf16.mxu0 %v349
        %481 = vmatmul.mubr.bf16.gmra.mrb[0].mxu0 %v348
        %v482 = vpop.f32.mrb[0].mxu0
        %v483 = vadd.f32 0.0, %v482
        %v484 = vpop.f32.mrb[0].mxu0
        %v485 = vpop.f32.mrb[0].mxu0
        %v486 = vadd.f32 0.0, %v485
        %v487 = vpop.f32.mrb[0].mxu0
        %488 = vdwg.mxu0
        %v489 = vadd.f32 %v306, %v483
        %v490 = vadd.f32 %v307, %v486
        %491 = vst [vmem:[#allocation2] sm:$0xff] %v489
        %492 = vst [vmem:[#allocation2 + $0x8] sm:$0xff] %v490
        %p493 = scmp.eq.s32.totalorder %s24, 3
        // Predicated region
        $region83: #{classification_forward.1} parent=69 // pred_check
          %p494 = pneg %p493
        $region84: #{classification_forward.1} parent=69 // pred_check_branch
          %496 = sbr.rel (%p494) target = $region86
        $region85: #{classification_forward.1} parent=69 // pred_region
          %v497 = vld [vmem:[#allocation2] sm:$0xff]
          %v498 = vld [vmem:[#allocation2 + $0x8] sm:$0xff]
          %v499 = vmul.f32 %v497, %v497
          %v500 = vmul.f32 %v498, %v498
          %501 = vadd.xlane.f32.xlu0 %v499
          %v502 = vpop.xlane.xlu0 %501
          %503 = vadd.xlane.f32.xlu0 %v500
          %v504 = vpop.xlane.xlu0 %503
          %s505 = sld [smem:[#allocation3]]
          %v506 = vmax.f32 %v502, 1e-12
          %v507 = vmax.f32 %v504, 1e-12
          %v508 = vrsqrt.pop %v506
          %v509 = vrsqrt.pop %v507
          %v510 = vstv %s505
          %v511 = vmul.f32 %v510, %v508
          %v512 = vmul.f32 %v510, %v509
          %v513 = vmul.f32 %v497, %v511
          %v514 = vmul.f32 %v498, %v512
          %v515 = vpack.c.bf16 %v514, %v513
          %v516 = vld [vmem:[%s3] sm:$0xf]
          %v517 = vld [vmem:[%s3 + $0x4] sm:$0xf]
          %v518 = vld [vmem:[%s3 + $0x8] sm:$0xf]
          %v519 = vld [vmem:[%s3 + $0xc] sm:$0xf]
          %v520 = vld [vmem:[%s3 + $0x10] sm:$0xf]
          %v521 = vld [vmem:[%s3 + $0x14] sm:$0xf]
          %v522 = vld [vmem:[%s3 + $0x18] sm:$0xf]
          %v523 = vld [vmem:[%s3 + $0x1c] sm:$0xf]
          %v524 = vld [vmem:[%s3 + $0x20] sm:$0xf]
          %v525 = vld [vmem:[%s3 + $0x24] sm:$0xf]
          %v526 = vld [vmem:[%s3 + $0x28] sm:$0xf]
          %v527 = vld [vmem:[%s3 + $0x2c] sm:$0xf]
          %v528 = vld [vmem:[%s3 + $0x30] sm:$0xf]
          %v529 = vld [vmem:[%s3 + $0x34] sm:$0xf]
          %v530 = vld [vmem:[%s3 + $0x38] sm:$0xf]
          %v531 = vld [vmem:[%s3 + $0x3c] sm:$0xf]
          %v548 = vunpack.c.l.b16 %v516
          %v549 = vunpack.c.l.b16 %v517
          %v550 = vunpack.c.l.b16 %v518
          %v551 = vunpack.c.l.b16 %v519
          %v552 = vunpack.c.l.b16 %v520
          %v553 = vunpack.c.l.b16 %v521
          %v554 = vunpack.c.l.b16 %v522
          %v555 = vunpack.c.l.b16 %v523
          %v556 = vunpack.c.l.b16 %v524
          %v557 = vunpack.c.l.b16 %v525
          %v558 = vunpack.c.l.b16 %v526
          %v559 = vunpack.c.l.b16 %v527
          %v560 = vunpack.c.l.b16 %v528
          %v561 = vunpack.c.l.b16 %v529
          %v562 = vunpack.c.l.b16 %v530
          %v563 = vunpack.c.l.b16 %v531
          %v564 = vpack.c.b16 %v549, %v548
          %v565 = vpack.c.b16 %v551, %v550
          %v566 = vpack.c.b16 %v553, %v552
          %v567 = vpack.c.b16 %v555, %v554
          %v568 = vpack.c.b16 %v557, %v556
          %v569 = vpack.c.b16 %v559, %v558
          %v570 = vpack.c.b16 %v561, %v560
          %v571 = vpack.c.b16 %v563, %v562
          %580 = vmatprep.subr.bf16.mxu0 0
          %581 = vmatpush1.bf16.xpose.msra.mxu0 %v564
          %582 = vmatprep.subr.bf16.mxu0 0
          %583 = vmatpush1.bf16.xpose.msra.mxu0 %v565
          %584 = vmatprep.subr.bf16.mxu0 0
          %585 = vmatpush1.bf16.xpose.msra.mxu0 %v566
          %586 = vmatprep.subr.bf16.mxu0 0
          %587 = vmatpush1.bf16.xpose.msra.mxu0 %v567
          %588 = vmatprep.subr.bf16.mxu0 0
          %589 = vmatpush1.bf16.xpose.msra.mxu0 %v568
          %590 = vmatprep.subr.bf16.mxu0 0
          %591 = vmatpush1.bf16.xpose.msra.mxu0 %v569
          %592 = vmatprep.subr.bf16.mxu0 0
          %593 = vmatpush1.bf16.xpose.msra.mxu0 %v570
          %594 = vmatprep.subr.bf16.mxu0 0
          %595 = vmatpush1.bf16.xpose.msra.mxu0 %v571
          %596 = vmatprep.subr.bf16.mxu0 0
          %597 = vmatpush1.bf16.xpose.msra.mxu0 0
          %598 = vmatprep.subr.bf16.mxu0 0
          %599 = vmatpush1.bf16.xpose.msra.mxu0 0
          %600 = vmatprep.subr.bf16.mxu0 0
          %601 = vmatpush1.bf16.xpose.msra.mxu0 0
          %602 = vmatprep.subr.bf16.mxu0 0
          %603 = vmatpush1.bf16.xpose.msra.mxu0 0
          %604 = vmatprep.subr.bf16.mxu0 0
          %605 = vmatpush1.bf16.xpose.msra.mxu0 0
          %606 = vmatprep.subr.bf16.mxu0 0
          %607 = vmatpush1.bf16.xpose.msra.mxu0 0
          %608 = vmatprep.subr.bf16.mxu0 0
          %609 = vmatpush1.bf16.xpose.msra.mxu0 0
          %610 = vmatprep.subr.bf16.mxu0 0
          %611 = vmatpush1.bf16.xpose.msra.mxu0 0
          %612 = vmatprep.mubr.bf16.mxu0 0
          %613 = vmatmul.mubr.bf16.gmra.mrb[0].mxu0 %v515
          %v614 = vpop.f32.mrb[0].mxu0
          %v615 = vadd.f32 0.0, %v614
          %v616 = vpop.f32.mrb[0].mxu0
          %v617 = vpop.f32.mrb[0].mxu0
          %v618 = vadd.f32 0.0, %v617
          %v619 = vpop.f32.mrb[0].mxu0
          %620 = vdwg.mxu0
          %621 = vmax.xlane.f32.xlu0 %v615
          %v622 = vpop.xlane.xlu0 %621
          %623 = vmax.xlane.f32.xlu0 %v618
          %v624 = vpop.xlane.xlu0 %623
          %v625 = vsub.f32 %v615, %v622
          %v626 = vsub.f32 %v618, %v624
          %v627 = vmul.f32 %v625, 1.442695
          %v628 = vpow.pop %v627
          %v629 = vmul.f32 %v626, 1.442695
          %v630 = vpow.pop %v629
          %631 = vadd.xlane.f32.xlu0 %v628
          %v632 = vpop.xlane.xlu0 %631
          %633 = vadd.xlane.f32.xlu0 %v630
          %v634 = vpop.xlane.xlu0 %633
          %v635 = vrcp.pop %v632
          %v636 = vrcp.pop %v634
          %v637 = vmul.f32 %v628, %v635
          %v638 = vmul.f32 %v630, %v636
          %639 = vst [vmem:[%s297] sm:$0xff] %v637
          %640 = vst [vmem:[%s297 + $0x8] sm:$0xff] %v638
        $region86: #{classification_forward.1} parent=69 // pred_fallthru
          _
        %s641 = smul.u32 2, %s23
        %p642 = scmp.lt.s32.totalorder %s641, 1
        %s643 = scalar_select %p642, %s641, 1
        %s644 = smul.addr %s643, 8
        %s645 = scalar_lea.vmem %s4, %s644
        // Predicated region
        $region87: #{classification_forward.1} parent=69 // pred_check
          %p646 = pneg %p145
        $region88: #{classification_forward.1} parent=69 // pred_check_branch
          %648 = sbr.rel (%p646) target = $region90
        $region89: #{classification_forward.1} parent=69 // pred_region
          %s649 = smul.u32 2, %s23
        $region90: #{classification_forward.1} parent=69 // pred_fallthru
          _
        // Predicated region
        $region91: #{classification_forward.1} parent=69 // pred_check
          %p650 = pneg %p145
        $region92: #{classification_forward.1} parent=69 // pred_check_branch
          %652 = sbr.rel (%p650) target = $region94
        $region93: #{classification_forward.1} parent=69 // pred_region
          %s653 = smul.u32 2, %s23
          %p654 = scmp.lt.s32.totalorder %s653, 1
          %s655 = scalar_select %p654, %s653, 1
          %s656 = smul.addr %s655, 8
          %s657 = scalar_lea.vmem %s4, %s656
        $region94: #{classification_forward.1} parent=69 // pred_fallthru
          _
      $region70: #{classification_forward.1} parent=5 // pred_fallthru
        _
      %p658 = scmp.le.s32.totalorder 2, %s14
      // Predicated region
      $region95: #{classification_forward.1} parent=5 // pred_check
        %p659 = pneg %p658
      $region96: #{classification_forward.1} parent=5 // pred_check_branch
        %661 = sbr.rel (%p659) target = $region98
      $region97: #{classification_forward.1} parent=5 // pred_region
        %s662 = ssub.s32 %s14, 2
      $region98: #{classification_forward.1} parent=5 // pred_fallthru
        _
    $region6: #{classification_forward.1} parent=1 // loop_footer
      %s18 = sadd.s32 1, %s14
    $region7: #{classification_forward.1} parent=1 // loop_footer_branch
      %13 = sbr.rel target = $region3
    $region8: #{classification_forward.1} parent=1 // loop_exit
      _
    %663 = vsyncpa [#allocation6], 1
    %s664 = scalar_lea.sflag [#allocation6], 1
    %665 = vsyncpa %s664, 1

</llo_original>
